<compile_context>
chip_gen: v6e
topology: v6e:2x2x1
jax: 0.10.0
libtpu: 0.0.40
codegen_flags: <defaults>
</compile_context>

<pallas_src>
import jax
import jax.numpy as jnp
from jax.experimental import pallas as pl
from jax.experimental.pallas import tpu as pltpu

_EPS = 1e-8  # torch.cosine_similarity default eps


def _ao_attention_kernel(q_ref, k_ref, v_ref,
                         wq_v_ref, wq_q_ref, bq_ref,
                         wv_v_ref, wv_q_ref, bv_ref,
                         out_ref):
    q = q_ref[0]          # (Sq, D)
    k = k_ref[0]          # (Sk, D)
    v = v_ref[0]          # (Sk, D)

    # --- cosine similarity between every query and every key ---
    q_hat = q / jnp.maximum(jnp.sqrt(jnp.sum(q * q, axis=-1, keepdims=True)), _EPS)
    k_hat = k / jnp.maximum(jnp.sqrt(jnp.sum(k * k, axis=-1, keepdims=True)), _EPS)
    cos = jnp.einsum('qd,kd->qk', q_hat, k_hat,
                     preferred_element_type=jnp.float32)          # (Sq, Sk)

    # --- f_similarity: divide by the sum over keys; Att: softmax over keys ---
    score = cos / jnp.sum(cos, axis=-1, keepdims=True)
    score_max = jnp.max(score, axis=-1, keepdims=True)
    exp_s = jnp.exp(score - score_max)
    alpha = exp_s / jnp.sum(exp_s, axis=-1, keepdims=True)        # (Sq, Sk)

    # --- attention-weighted values ---
    v_att = jnp.dot(alpha, v, preferred_element_type=jnp.float32)  # (Sq, D)

    # --- output projections: s = [v_att, q];  s @ W == v_att @ W[:D] + q @ W[D:] ---
    val = (jnp.dot(v_att, wq_v_ref[...], preferred_element_type=jnp.float32)
           + jnp.dot(q, wq_q_ref[...], preferred_element_type=jnp.float32)
           + bq_ref[...])
    gate = jax.nn.sigmoid(
        jnp.dot(v_att, wv_v_ref[...], preferred_element_type=jnp.float32)
        + jnp.dot(q, wv_q_ref[...], preferred_element_type=jnp.float32)
        + bv_ref[...])

    out_ref[0] = (gate * val).astype(out_ref.dtype)


def ao_attention(Q, K, V, params):
    """Q: (B, Sq, D), K/V: (B, Sk, D). params holds pre-transposed (2D, D) weights."""
    B, Sq, D = Q.shape
    Sk = K.shape[1]

    # Split the (2D, D) weights so the kernel never needs a lane-concat.
    wq_t, wv_t = params["wq_t"], params["wv_t"]
    wq_v, wq_q = wq_t[:D], wq_t[D:]
    wv_v, wv_q = wv_t[:D], wv_t[D:]
    bq, bv = params["bq"], params["bv"]

    def per_batch(s1, s2):
        return pl.BlockSpec((1, s1, s2), lambda b: (b, 0, 0))

    def resident(shape):
        return pl.BlockSpec(shape, lambda b: (0, 0))

    return pl.pallas_call(
        _ao_attention_kernel,
        grid=(B,),
        in_specs=[
            per_batch(Sq, D),       # Q
            per_batch(Sk, D),       # K
            per_batch(Sk, D),       # V
            resident((D, D)),       # W_q  rows for V_
            resident((D, D)),       # W_q  rows for Q
            resident((1, D)),       # b_q
            resident((D, D)),       # W_v  rows for V_
            resident((D, D)),       # W_v  rows for Q
            resident((1, D)),       # b_v
        ],
        out_specs=pl.BlockSpec((1, Sq, D), lambda b: (b, 0, 0)),
        out_shape=jax.ShapeDtypeStruct((B, Sq, D), Q.dtype),
        compiler_params=pltpu.CompilerParams(
            dimension_semantics=("parallel",)),
    )(Q, K, V, wq_v, wq_q, bq, wv_v, wv_q, bv)


def ao_attention_ref(Q, K, V, params):
    """Pure-JAX reference mirroring the PyTorch module (concat form)."""
    qn = jnp.maximum(jnp.sqrt(jnp.sum(Q * Q, axis=-1, keepdims=True)), _EPS)
    kn = jnp.maximum(jnp.sqrt(jnp.sum(K * K, axis=-1, keepdims=True)), _EPS)
    cos = jnp.einsum('bqd,bkd->bqk', Q / qn, K / kn)
    score = cos / jnp.sum(cos, axis=-1, keepdims=True)
    m = jnp.max(score, axis=-1, keepdims=True)
    e = jnp.exp(score - m)
    alpha = e / jnp.sum(e, axis=-1, keepdims=True)
    v_att = jnp.einsum('bqk,bkd->bqd', alpha, V)
    s = jnp.concatenate([v_att, Q], axis=-1)
    val = s @ params["wq_t"] + params["bq"]
    gate = jax.nn.sigmoid(s @ params["wv_t"] + params["bv"])
    return gate * val


def init_params(key, D):
    """PyTorch-Linear-style uniform init, pre-transposed to (in=2D, out=D)."""
    k1, k2, k3, k4 = jax.random.split(key, 4)
    bound = 1.0 / ((2.0 * D) ** 0.5)
    return {
        "wq_t": jax.random.uniform(k1, (2 * D, D), jnp.float32, -bound, bound),
        "wv_t": jax.random.uniform(k2, (2 * D, D), jnp.float32, -bound, bound),
        "bq": jax.random.uniform(k3, (1, D), jnp.float32, -bound, bound),
        "bv": jax.random.uniform(k4, (1, D), jnp.float32, -bound, bound),
    }


if __name__ == "__main__":
    B, Sq, Sk, D = 2, 8, 8, 32

    key = jax.random.PRNGKey(0)
    kq, kk, kv, kp = jax.random.split(key, 4)

    # Non-negative Q/K (post-ReLU-style features, as in the real model) keep the
    # f_similarity cosine-sum normalisation well-conditioned.
    Q = jax.random.uniform(kq, (B, Sq, D), jnp.float32)
    K = jax.random.uniform(kk, (B, Sk, D), jnp.float32)
    V = jax.random.normal(kv, (B, Sk, D), jnp.float32)
    params = init_params(kp, D)

    out = jax.jit(ao_attention)(Q, K, V, params)
    jax.block_until_ready(out)

    ref = ao_attention_ref(Q, K, V, params)
    assert out.shape == (B, Sq, D)
    assert jnp.allclose(out, ref, atol=2e-4, rtol=2e-4), float(jnp.max(jnp.abs(out - ref)))

    print("KERNEL_OK")
</pallas_src>

<mosaic_0001>
module attributes {stable_mosaic.version = 11 : i64} {
  func.func @_ao_attention_kernel(%arg0: i32, %arg1: memref<1x8x32xf32, #tpu.memory_space<vmem>>, %arg2: memref<1x8x32xf32, #tpu.memory_space<vmem>>, %arg3: memref<1x8x32xf32, #tpu.memory_space<vmem>>, %arg4: memref<32x32xf32, #tpu.memory_space<vmem>>, %arg5: memref<32x32xf32, #tpu.memory_space<vmem>>, %arg6: memref<1x32xf32, #tpu.memory_space<vmem>>, %arg7: memref<32x32xf32, #tpu.memory_space<vmem>>, %arg8: memref<32x32xf32, #tpu.memory_space<vmem>>, %arg9: memref<1x32xf32, #tpu.memory_space<vmem>>, %arg10: memref<1x8x32xf32, #tpu.memory_space<vmem>>) attributes {dimension_semantics = [#tpu.dimension_semantics<parallel>], iteration_bounds = array<i64: 2>, scalar_prefetch = 0 : i64, scratch_operands = 0 : i64, tpu.core_type = #tpu.core_type<tc>, window_params = [{transform_indices = @transform_0, window_bounds = array<i64: 1, 8, 32>}, {transform_indices = @transform_1, window_bounds = array<i64: 1, 8, 32>}, {transform_indices = @transform_2, window_bounds = array<i64: 1, 8, 32>}, {pipeline_mode = #tpu.pipeline_mode<synchronous>, transform_indices = @transform_3, window_bounds = array<i64: 32, 32>}, {pipeline_mode = #tpu.pipeline_mode<synchronous>, transform_indices = @transform_4, window_bounds = array<i64: 32, 32>}, {pipeline_mode = #tpu.pipeline_mode<synchronous>, transform_indices = @transform_5, window_bounds = array<i64: 1, 32>}, {pipeline_mode = #tpu.pipeline_mode<synchronous>, transform_indices = @transform_6, window_bounds = array<i64: 32, 32>}, {pipeline_mode = #tpu.pipeline_mode<synchronous>, transform_indices = @transform_7, window_bounds = array<i64: 32, 32>}, {pipeline_mode = #tpu.pipeline_mode<synchronous>, transform_indices = @transform_8, window_bounds = array<i64: 1, 32>}, {transform_indices = @transform_9, window_bounds = array<i64: 1, 8, 32>}]} {
    %c0 = arith.constant 0 : index
    %c0_0 = arith.constant 0 : index
    %c0_1 = arith.constant 0 : index
    %0 = vector.load %arg1[%c0, %c0_0, %c0_1] : memref<1x8x32xf32, #tpu.memory_space<vmem>>, vector<1x8x32xf32>
    %1 = vector.shape_cast %0 : vector<1x8x32xf32> to vector<8x32xf32>
    %c0_2 = arith.constant 0 : index
    %c0_3 = arith.constant 0 : index
    %c0_4 = arith.constant 0 : index
    %2 = vector.load %arg2[%c0_2, %c0_3, %c0_4] : memref<1x8x32xf32, #tpu.memory_space<vmem>>, vector<1x8x32xf32>
    %3 = vector.shape_cast %2 : vector<1x8x32xf32> to vector<8x32xf32>
    %c0_5 = arith.constant 0 : index
    %c0_6 = arith.constant 0 : index
    %c0_7 = arith.constant 0 : index
    %4 = vector.load %arg3[%c0_5, %c0_6, %c0_7] : memref<1x8x32xf32, #tpu.memory_space<vmem>>, vector<1x8x32xf32>
    %5 = vector.shape_cast %4 : vector<1x8x32xf32> to vector<8x32xf32>
    %6 = arith.mulf %1, %1 : vector<8x32xf32>
    %cst = arith.constant dense<0.000000e+00> : vector<8xf32>
    %7 = vector.multi_reduction <add>, %6, %cst [1] : vector<8x32xf32> to vector<8xf32>
    %8 = vector.shape_cast %7 : vector<8xf32> to vector<8x1xf32>
    %9 = math.sqrt %8 : vector<8x1xf32>
    %cst_8 = arith.constant 9.99999993E-9 : f32
    %10 = vector.broadcast %cst_8 : f32 to vector<8x1xf32>
    %11 = arith.maximumf %9, %10 : vector<8x1xf32>
    %12 = vector.broadcast %11 : vector<8x1xf32> to vector<8x32xf32>
    %13 = arith.divf %1, %12 : vector<8x32xf32>
    %14 = arith.mulf %3, %3 : vector<8x32xf32>
    %cst_9 = arith.constant dense<0.000000e+00> : vector<8xf32>
    %15 = vector.multi_reduction <add>, %14, %cst_9 [1] : vector<8x32xf32> to vector<8xf32>
    %16 = vector.shape_cast %15 : vector<8xf32> to vector<8x1xf32>
    %17 = math.sqrt %16 : vector<8x1xf32>
    %cst_10 = arith.constant 9.99999993E-9 : f32
    %18 = vector.broadcast %cst_10 : f32 to vector<8x1xf32>
    %19 = arith.maximumf %17, %18 : vector<8x1xf32>
    %20 = vector.broadcast %19 : vector<8x1xf32> to vector<8x32xf32>
    %21 = arith.divf %3, %20 : vector<8x32xf32>
    "tpu.trace_start"() <{level = 10 : i32, message = "qd,kd->qk"}> : () -> ()
    %cst_11 = arith.constant dense<0.000000e+00> : vector<8x8xf32>
    %22 = tpu.matmul %13, %21, %cst_11 {dimension_numbers = #tpu.dot_dimension_numbers<[1], [1], [0], [0], [0, 0, 1, 0], [], []>} : vector<8x32xf32>, vector<8x32xf32>, vector<8x8xf32> -> vector<8x8xf32>
    "tpu.trace_stop"() : () -> ()
    %cst_12 = arith.constant dense<0.000000e+00> : vector<8xf32>
    %23 = vector.multi_reduction <add>, %22, %cst_12 [1] : vector<8x8xf32> to vector<8xf32>
    %24 = vector.shape_cast %23 : vector<8xf32> to vector<8x1xf32>
    %25 = vector.broadcast %24 : vector<8x1xf32> to vector<8x8xf32>
    %26 = arith.divf %22, %25 : vector<8x8xf32>
    %cst_13 = arith.constant dense<0xFF800000> : vector<8xf32>
    %27 = vector.multi_reduction <maximumf>, %26, %cst_13 [1] : vector<8x8xf32> to vector<8xf32>
    %28 = vector.shape_cast %27 : vector<8xf32> to vector<8x1xf32>
    %29 = vector.broadcast %28 : vector<8x1xf32> to vector<8x8xf32>
    %30 = arith.subf %26, %29 : vector<8x8xf32>
    %31 = math.exp %30 : vector<8x8xf32>
    %cst_14 = arith.constant dense<0.000000e+00> : vector<8xf32>
    %32 = vector.multi_reduction <add>, %31, %cst_14 [1] : vector<8x8xf32> to vector<8xf32>
    %33 = vector.shape_cast %32 : vector<8xf32> to vector<8x1xf32>
    %34 = vector.broadcast %33 : vector<8x1xf32> to vector<8x8xf32>
    %35 = arith.divf %31, %34 : vector<8x8xf32>
    %cst_15 = arith.constant dense<0.000000e+00> : vector<8x32xf32>
    %36 = tpu.matmul %35, %5, %cst_15 {dimension_numbers = #tpu.dot_dimension_numbers<[1], [0], [0], [1], [0, 0, 1, 1], [], []>} : vector<8x8xf32>, vector<8x32xf32>, vector<8x32xf32> -> vector<8x32xf32>
    %c0_16 = arith.constant 0 : index
    %c0_17 = arith.constant 0 : index
    %37 = vector.load %arg4[%c0_16, %c0_17] : memref<32x32xf32, #tpu.memory_space<vmem>>, vector<32x32xf32>
    %cst_18 = arith.constant dense<0.000000e+00> : vector<8x32xf32>
    %38 = tpu.matmul %36, %37, %cst_18 {dimension_numbers = #tpu.dot_dimension_numbers<[1], [0], [0], [1], [0, 0, 1, 1], [], []>} : vector<8x32xf32>, vector<32x32xf32>, vector<8x32xf32> -> vector<8x32xf32>
    %c0_19 = arith.constant 0 : index
    %c0_20 = arith.constant 0 : index
    %39 = vector.load %arg5[%c0_19, %c0_20] : memref<32x32xf32, #tpu.memory_space<vmem>>, vector<32x32xf32>
    %cst_21 = arith.constant dense<0.000000e+00> : vector<8x32xf32>
    %40 = tpu.matmul %1, %39, %cst_21 {dimension_numbers = #tpu.dot_dimension_numbers<[1], [0], [0], [1], [0, 0, 1, 1], [], []>} : vector<8x32xf32>, vector<32x32xf32>, vector<8x32xf32> -> vector<8x32xf32>
    %41 = arith.addf %38, %40 : vector<8x32xf32>
    %c0_22 = arith.constant 0 : index
    %c0_23 = arith.constant 0 : index
    %42 = vector.load %arg6[%c0_22, %c0_23] : memref<1x32xf32, #tpu.memory_space<vmem>>, vector<1x32xf32>
    %43 = vector.broadcast %42 : vector<1x32xf32> to vector<8x32xf32>
    %44 = arith.addf %41, %43 : vector<8x32xf32>
    %c0_24 = arith.constant 0 : index
    %c0_25 = arith.constant 0 : index
    %45 = vector.load %arg7[%c0_24, %c0_25] : memref<32x32xf32, #tpu.memory_space<vmem>>, vector<32x32xf32>
    %cst_26 = arith.constant dense<0.000000e+00> : vector<8x32xf32>
    %46 = tpu.matmul %36, %45, %cst_26 {dimension_numbers = #tpu.dot_dimension_numbers<[1], [0], [0], [1], [0, 0, 1, 1], [], []>} : vector<8x32xf32>, vector<32x32xf32>, vector<8x32xf32> -> vector<8x32xf32>
    %c0_27 = arith.constant 0 : index
    %c0_28 = arith.constant 0 : index
    %47 = vector.load %arg8[%c0_27, %c0_28] : memref<32x32xf32, #tpu.memory_space<vmem>>, vector<32x32xf32>
    %cst_29 = arith.constant dense<0.000000e+00> : vector<8x32xf32>
    %48 = tpu.matmul %1, %47, %cst_29 {dimension_numbers = #tpu.dot_dimension_numbers<[1], [0], [0], [1], [0, 0, 1, 1], [], []>} : vector<8x32xf32>, vector<32x32xf32>, vector<8x32xf32> -> vector<8x32xf32>
    %49 = arith.addf %46, %48 : vector<8x32xf32>
    %c0_30 = arith.constant 0 : index
    %c0_31 = arith.constant 0 : index
    %50 = vector.load %arg9[%c0_30, %c0_31] : memref<1x32xf32, #tpu.memory_space<vmem>>, vector<1x32xf32>
    %51 = vector.broadcast %50 : vector<1x32xf32> to vector<8x32xf32>
    %52 = arith.addf %49, %51 : vector<8x32xf32>
    %53 = arith.negf %52 : vector<8x32xf32>
    %54 = math.exp %53 : vector<8x32xf32>
    %cst_32 = arith.constant 1.000000e+00 : f32
    %55 = vector.broadcast %cst_32 : f32 to vector<8x32xf32>
    %56 = arith.addf %55, %54 : vector<8x32xf32>
    %57 = arith.divf %55, %56 : vector<8x32xf32>
    %58 = arith.mulf %57, %44 : vector<8x32xf32>
    %c0_33 = arith.constant 0 : index
    %c0_34 = arith.constant 0 : index
    %c0_35 = arith.constant 0 : index
    %59 = vector.load %arg10[%c0_33, %c0_34, %c0_35] : memref<1x8x32xf32, #tpu.memory_space<vmem>>, vector<1x8x32xf32>
    %60 = vector.shape_cast %59 : vector<1x8x32xf32> to vector<8x32xf32>
    %61 = vector.shape_cast %58 : vector<8x32xf32> to vector<1x8x32xf32>
    tpu.vector_store %arg10[%c0_33, %c0_34, %c0_35], %61 {strides = array<i32>} : memref<1x8x32xf32, #tpu.memory_space<vmem>>, vector<1x8x32xf32>,
    return
  }
  func.func @transform_0(%arg0: i32) -> (i32, i32, i32) {
    %c0_i32 = arith.constant 0 : i32
    %c0_i32_0 = arith.constant 0 : i32
    %c0_i32_1 = arith.constant 0 : i32
    return %arg0, %c0_i32, %c0_i32_0 : i32, i32, i32
  }
  func.func @transform_1(%arg0: i32) -> (i32, i32, i32) {
    %c0_i32 = arith.constant 0 : i32
    %c0_i32_0 = arith.constant 0 : i32
    %c0_i32_1 = arith.constant 0 : i32
    return %arg0, %c0_i32, %c0_i32_0 : i32, i32, i32
  }
  func.func @transform_2(%arg0: i32) -> (i32, i32, i32) {
    %c0_i32 = arith.constant 0 : i32
    %c0_i32_0 = arith.constant 0 : i32
    %c0_i32_1 = arith.constant 0 : i32
    return %arg0, %c0_i32, %c0_i32_0 : i32, i32, i32
  }
  func.func @transform_3(%arg0: i32) -> (i32, i32) {
    %c0_i32 = arith.constant 0 : i32
    %c0_i32_0 = arith.constant 0 : i32
    %c0_i32_1 = arith.constant 0 : i32
    return %c0_i32, %c0_i32_0 : i32, i32
  }
  func.func @transform_4(%arg0: i32) -> (i32, i32) {
    %c0_i32 = arith.constant 0 : i32
    %c0_i32_0 = arith.constant 0 : i32
    %c0_i32_1 = arith.constant 0 : i32
    return %c0_i32, %c0_i32_0 : i32, i32
  }
  func.func @transform_5(%arg0: i32) -> (i32, i32) {
    %c0_i32 = arith.constant 0 : i32
    %c0_i32_0 = arith.constant 0 : i32
    %c0_i32_1 = arith.constant 0 : i32
    return %c0_i32, %c0_i32_0 : i32, i32
  }
  func.func @transform_6(%arg0: i32) -> (i32, i32) {
    %c0_i32 = arith.constant 0 : i32
    %c0_i32_0 = arith.constant 0 : i32
    %c0_i32_1 = arith.constant 0 : i32
    return %c0_i32, %c0_i32_0 : i32, i32
  }
  func.func @transform_7(%arg0: i32) -> (i32, i32) {
    %c0_i32 = arith.constant 0 : i32
    %c0_i32_0 = arith.constant 0 : i32
    %c0_i32_1 = arith.constant 0 : i32
    return %c0_i32, %c0_i32_0 : i32, i32
  }
  func.func @transform_8(%arg0: i32) -> (i32, i32) {
    %c0_i32 = arith.constant 0 : i32
    %c0_i32_0 = arith.constant 0 : i32
    %c0_i32_1 = arith.constant 0 : i32
    return %c0_i32, %c0_i32_0 : i32, i32
  }
  func.func @transform_9(%arg0: i32) -> (i32, i32, i32) {
    %c0_i32 = arith.constant 0 : i32
    %c0_i32_0 = arith.constant 0 : i32
    %c0_i32_1 = arith.constant 0 : i32
    return %arg0, %c0_i32, %c0_i32_0 : i32, i32, i32
  }
}

</mosaic_0001>

<llo_original>
// kernel: ao_attention.1
$region0: #{ao_attention.1}
  #allocation0 [shape = 'u32[]', space=smem, size = 0x4, offset = 0x4, fixed_abs, tag = 'smem constant byte address 0x4 - core index']
  #allocation1 [shape = 'u32[144,128]{1,0:T(1,128)}', space=vmem, size = 0x12000, scoped, tag = 'internal scratch']
  %s0 = inlined_call_operand.vmem [shape: f32[2,8,32], index: 0, kind: input, shape index: {}]
  %s1 = inlined_call_operand.vmem [shape: f32[2,8,32], index: 1, kind: input, shape index: {}]
  %s2 = inlined_call_operand.vmem [shape: f32[2,8,32], index: 2, kind: input, shape index: {}]
  %s3 = inlined_call_operand.vmem [shape: f32[32,32], index: 3, kind: input, shape index: {}]
  %s4 = inlined_call_operand.vmem [shape: f32[32,32], index: 4, kind: input, shape index: {}]
  %s5 = inlined_call_operand.vmem [shape: f32[1,32], index: 5, kind: input, shape index: {}]
  %s6 = inlined_call_operand.vmem [shape: f32[32,32], index: 6, kind: input, shape index: {}]
  %s7 = inlined_call_operand.vmem [shape: f32[32,32], index: 7, kind: input, shape index: {}]
  %s8 = inlined_call_operand.vmem [shape: f32[1,32], index: 8, kind: input, shape index: {}]
  %s9 = inlined_call_operand.hbm [shape: f32[2,8,32], index: 9, kind: output, shape index: {}]
  %s10 = sld [smem:[#allocation0]]
  $region69: #{ao_attention.1} parent=0
    _
  %s12 = ssub.s32 1, %s10
  %s13 = scalar_select 0, %s12, %s10
  $region1: #{ao_attention.1} parent=0
    #allocation2 [shape = 'u8[8192]{0}', space=vmem, size = 0x2000, scoped, tag = 'output window, operand 0']
    #allocation3 [shape = 's32[2]{0}', space=sflag, size = 0x8, scoped, tag = 'scoped memory for ao_attention.1']
    %14 = vsyncpa [#allocation3], 0
    %s15 = scalar_lea.sflag [#allocation3], 1
    %16 = vsyncpa %s15, 0
    loop: start=0, step=1, limit=4
    $region2: #{ao_attention.1} parent=1 // loop_pre_header
      _
    $region3: #{ao_attention.1} parent=1 // loop_header
      %s18 = sphi 0, %s22
      %p19 = scmp.ge.s32.totalorder %s18, 4
      %s28 = sphi 0, %s30
      %s31 = sphi 0, %s28
      %s32 = sphi 0, %s31
      %s48 = sphi 0, %s32
      %s54 = sphi 0, %s56
      %s57 = sphi 0, %s54
      %s58 = sphi 0, %s57
      %s74 = sphi 0, %s58
      %s80 = sphi 0, %s82
      %s83 = sphi 0, %s80
      %s84 = sphi 0, %s83
      %s100 = sphi 0, %s84
      %s104 = sphi 0, %s104
      %s106 = sphi 0, %s104
      %s107 = sphi 0, %s106
      %s121 = sphi 0, %s107
      %s125 = sphi 0, %s125
      %s127 = sphi 0, %s125
      %s128 = sphi 0, %s127
      %s142 = sphi 0, %s128
      %s146 = sphi 0, %s146
      %s148 = sphi 0, %s146
      %s149 = sphi 0, %s148
      %s163 = sphi 0, %s149
      %s167 = sphi 0, %s167
      %s169 = sphi 0, %s167
      %s170 = sphi 0, %s169
      %s184 = sphi 0, %s170
      %s188 = sphi 0, %s188
      %s190 = sphi 0, %s188
      %s191 = sphi 0, %s190
      %s205 = sphi 0, %s191
      %s209 = sphi 0, %s209
      %s211 = sphi 0, %s209
      %s212 = sphi 0, %s211
      %s226 = sphi 0, %s212
      %s232 = sphi 0, %s234
      %s235 = sphi 0, %s232
      %s236 = sphi 0, %s235
      %s252 = sphi 0, %s236
    $region4: #{ao_attention.1} parent=1 // loop_header_branch
      %21 = sbr.rel (%p19) target = $region8
    $region5: #{ao_attention.1} parent=1 // loop_body
      %s23 = ssub.s32 %s18, 1
      %s24 = ssub.s32 %s18, 2
      %s25 = sadd.s32 %s18, 1
      %s26 = ssub.s32 %s18, %s25
      %p27 = scmp.eq.s32.totalorder %s26, 0
      %s29 = sadd.s32 %s28, 1
      %s30 = scalar_select %p27, %s28, %s29
      %p33 = pneg %p27
      %p34 = scmp.eq.s32.totalorder %s18, 1
      %p35 = por %p33, %p34
      %p36 = scmp.ne.s32.totalorder %s28, %s31
      %p37 = scmp.eq.s32.totalorder %s18, 0
      %p38 = por %p36, %p37
      %p39 = scmp.ne.s32.totalorder %s28, %s31
      %p40 = scmp.eq.s32.totalorder %s23, 1
      %p41 = por %p39, %p40
      %p42 = scmp.ne.s32.totalorder %s31, %s32
      %p43 = scmp.eq.s32.totalorder %s23, 0
      %p44 = por %p42, %p43
      %p45 = scmp.ne.s32.totalorder %s31, %s32
      %p46 = scmp.eq.s32.totalorder %s24, 1
      %p47 = por %p45, %p46
      %p49 = scmp.ne.s32.totalorder %s32, %s48
      %p50 = scmp.eq.s32.totalorder %s24, 0
      %p51 = por %p49, %p50
      %s52 = ssub.s32 %s18, %s25
      %p53 = scmp.eq.s32.totalorder %s52, 0
      %s55 = sadd.s32 %s54, 1
      %s56 = scalar_select %p53, %s54, %s55
      %p59 = pneg %p53
      %p60 = scmp.eq.s32.totalorder %s18, 1
      %p61 = por %p59, %p60
      %p62 = scmp.ne.s32.totalorder %s54, %s57
      %p63 = scmp.eq.s32.totalorder %s18, 0
      %p64 = por %p62, %p63
      %p65 = scmp.ne.s32.totalorder %s54, %s57
      %p66 = scmp.eq.s32.totalorder %s23, 1
      %p67 = por %p65, %p66
      %p68 = scmp.ne.s32.totalorder %s57, %s58
      %p69 = scmp.eq.s32.totalorder %s23, 0
      %p70 = por %p68, %p69
      %p71 = scmp.ne.s32.totalorder %s57, %s58
      %p72 = scmp.eq.s32.totalorder %s24, 1
      %p73 = por %p71, %p72
      %p75 = scmp.ne.s32.totalorder %s58, %s74
      %p76 = scmp.eq.s32.totalorder %s24, 0
      %p77 = por %p75, %p76
      %s78 = ssub.s32 %s18, %s25
      %p79 = scmp.eq.s32.totalorder %s78, 0
      %s81 = sadd.s32 %s80, 1
      %s82 = scalar_select %p79, %s80, %s81
      %p85 = pneg %p79
      %p86 = scmp.eq.s32.totalorder %s18, 1
      %p87 = por %p85, %p86
      %p88 = scmp.ne.s32.totalorder %s80, %s83
      %p89 = scmp.eq.s32.totalorder %s18, 0
      %p90 = por %p88, %p89
      %p91 = scmp.ne.s32.totalorder %s80, %s83
      %p92 = scmp.eq.s32.totalorder %s23, 1
      %p93 = por %p91, %p92
      %p94 = scmp.ne.s32.totalorder %s83, %s84
      %p95 = scmp.eq.s32.totalorder %s23, 0
      %p96 = por %p94, %p95
      %p97 = scmp.ne.s32.totalorder %s83, %s84
      %p98 = scmp.eq.s32.totalorder %s24, 1
      %p99 = por %p97, %p98
      %p101 = scmp.ne.s32.totalorder %s84, %s100
      %p102 = scmp.eq.s32.totalorder %s24, 0
      %p103 = por %p101, %p102
      %s105 = sadd.s32 %s104, 1
      %p108 = scmp.eq.s32.totalorder %s18, 1
      %p109 = scmp.ne.s32.totalorder %s104, %s106
      %p110 = scmp.eq.s32.totalorder %s18, 0
      %p111 = por %p109, %p110
      %p112 = scmp.ne.s32.totalorder %s104, %s106
      %p113 = scmp.eq.s32.totalorder %s23, 1
      %p114 = por %p112, %p113
      %p115 = scmp.ne.s32.totalorder %s106, %s107
      %p116 = scmp.eq.s32.totalorder %s23, 0
      %p117 = por %p115, %p116
      %p118 = scmp.ne.s32.totalorder %s106, %s107
      %p119 = scmp.eq.s32.totalorder %s24, 1
      %p120 = por %p118, %p119
      %p122 = scmp.ne.s32.totalorder %s107, %s121
      %p123 = scmp.eq.s32.totalorder %s24, 0
      %p124 = por %p122, %p123
      %s126 = sadd.s32 %s125, 1
      %p129 = scmp.eq.s32.totalorder %s18, 1
      %p130 = scmp.ne.s32.totalorder %s125, %s127
      %p131 = scmp.eq.s32.totalorder %s18, 0
      %p132 = por %p130, %p131
      %p133 = scmp.ne.s32.totalorder %s125, %s127
      %p134 = scmp.eq.s32.totalorder %s23, 1
      %p135 = por %p133, %p134
      %p136 = scmp.ne.s32.totalorder %s127, %s128
      %p137 = scmp.eq.s32.totalorder %s23, 0
      %p138 = por %p136, %p137
      %p139 = scmp.ne.s32.totalorder %s127, %s128
      %p140 = scmp.eq.s32.totalorder %s24, 1
      %p141 = por %p139, %p140
      %p143 = scmp.ne.s32.totalorder %s128, %s142
      %p144 = scmp.eq.s32.totalorder %s24, 0
      %p145 = por %p143, %p144
      %s147 = sadd.s32 %s146, 1
      %p150 = scmp.eq.s32.totalorder %s18, 1
      %p151 = scmp.ne.s32.totalorder %s146, %s148
      %p152 = scmp.eq.s32.totalorder %s18, 0
      %p153 = por %p151, %p152
      %p154 = scmp.ne.s32.totalorder %s146, %s148
      %p155 = scmp.eq.s32.totalorder %s23, 1
      %p156 = por %p154, %p155
      %p157 = scmp.ne.s32.totalorder %s148, %s149
      %p158 = scmp.eq.s32.totalorder %s23, 0
      %p159 = por %p157, %p158
      %p160 = scmp.ne.s32.totalorder %s148, %s149
      %p161 = scmp.eq.s32.totalorder %s24, 1
      %p162 = por %p160, %p161
      %p164 = scmp.ne.s32.totalorder %s149, %s163
      %p165 = scmp.eq.s32.totalorder %s24, 0
      %p166 = por %p164, %p165
      %s168 = sadd.s32 %s167, 1
      %p171 = scmp.eq.s32.totalorder %s18, 1
      %p172 = scmp.ne.s32.totalorder %s167, %s169
      %p173 = scmp.eq.s32.totalorder %s18, 0
      %p174 = por %p172, %p173
      %p175 = scmp.ne.s32.totalorder %s167, %s169
      %p176 = scmp.eq.s32.totalorder %s23, 1
      %p177 = por %p175, %p176
      %p178 = scmp.ne.s32.totalorder %s169, %s170
      %p179 = scmp.eq.s32.totalorder %s23, 0
      %p180 = por %p178, %p179
      %p181 = scmp.ne.s32.totalorder %s169, %s170
      %p182 = scmp.eq.s32.totalorder %s24, 1
      %p183 = por %p181, %p182
      %p185 = scmp.ne.s32.totalorder %s170, %s184
      %p186 = scmp.eq.s32.totalorder %s24, 0
      %p187 = por %p185, %p186
      %s189 = sadd.s32 %s188, 1
      %p192 = scmp.eq.s32.totalorder %s18, 1
      %p193 = scmp.ne.s32.totalorder %s188, %s190
      %p194 = scmp.eq.s32.totalorder %s18, 0
      %p195 = por %p193, %p194
      %p196 = scmp.ne.s32.totalorder %s188, %s190
      %p197 = scmp.eq.s32.totalorder %s23, 1
      %p198 = por %p196, %p197
      %p199 = scmp.ne.s32.totalorder %s190, %s191
      %p200 = scmp.eq.s32.totalorder %s23, 0
      %p201 = por %p199, %p200
      %p202 = scmp.ne.s32.totalorder %s190, %s191
      %p203 = scmp.eq.s32.totalorder %s24, 1
      %p204 = por %p202, %p203
      %p206 = scmp.ne.s32.totalorder %s191, %s205
      %p207 = scmp.eq.s32.totalorder %s24, 0
      %p208 = por %p206, %p207
      %s210 = sadd.s32 %s209, 1
      %p213 = scmp.eq.s32.totalorder %s18, 1
      %p214 = scmp.ne.s32.totalorder %s209, %s211
      %p215 = scmp.eq.s32.totalorder %s18, 0
      %p216 = por %p214, %p215
      %p217 = scmp.ne.s32.totalorder %s209, %s211
      %p218 = scmp.eq.s32.totalorder %s23, 1
      %p219 = por %p217, %p218
      %p220 = scmp.ne.s32.totalorder %s211, %s212
      %p221 = scmp.eq.s32.totalorder %s23, 0
      %p222 = por %p220, %p221
      %p223 = scmp.ne.s32.totalorder %s211, %s212
      %p224 = scmp.eq.s32.totalorder %s24, 1
      %p225 = por %p223, %p224
      %p227 = scmp.ne.s32.totalorder %s212, %s226
      %p228 = scmp.eq.s32.totalorder %s24, 0
      %p229 = por %p227, %p228
      %s230 = ssub.s32 %s18, %s25
      %p231 = scmp.eq.s32.totalorder %s230, 0
      %s233 = sadd.s32 %s232, 1
      %s234 = scalar_select %p231, %s232, %s233
      %p237 = pneg %p231
      %p238 = scmp.eq.s32.totalorder %s18, 1
      %p239 = por %p237, %p238
      %p240 = scmp.ne.s32.totalorder %s232, %s235
      %p241 = scmp.eq.s32.totalorder %s18, 0
      %p242 = por %p240, %p241
      %p243 = scmp.ne.s32.totalorder %s232, %s235
      %p244 = scmp.eq.s32.totalorder %s23, 1
      %p245 = por %p243, %p244
      %p246 = scmp.ne.s32.totalorder %s235, %s236
      %p247 = scmp.eq.s32.totalorder %s23, 0
      %p248 = por %p246, %p247
      %p249 = scmp.ne.s32.totalorder %s235, %s236
      %p250 = scmp.eq.s32.totalorder %s24, 1
      %p251 = por %p249, %p250
      %p253 = scmp.ne.s32.totalorder %s236, %s252
      %p254 = scmp.eq.s32.totalorder %s24, 0
      %p255 = por %p253, %p254
      %p256 = scmp.le.s32.totalorder 1, %s18
      %p257 = scmp.lt.s32.totalorder %s18, 3
      %p258 = pnand %p256, %p257
      %p259 = pneg %p258
      // Predicated region
      $region9: #{ao_attention.1} parent=5 // pred_check
        _
      $region10: #{ao_attention.1} parent=5 // pred_check_branch
        %261 = sbr.rel (%p258) target = $region12
      $region11: #{ao_attention.1} parent=5 // pred_region
        %s262 = ssub.s32 %s18, 1
        // Predicated region
        $region13: #{ao_attention.1} parent=11 // pred_check
          %p263 = pneg %p117
        $region14: #{ao_attention.1} parent=11 // pred_check_branch
          %265 = sbr.rel (%p263) target = $region16
        $region15: #{ao_attention.1} parent=11 // pred_region
          _
        $region16: #{ao_attention.1} parent=11 // pred_fallthru
          _
        // Predicated region
        $region17: #{ao_attention.1} parent=11 // pred_check
          %p266 = pneg %p138
        $region18: #{ao_attention.1} parent=11 // pred_check_branch
          %268 = sbr.rel (%p266) target = $region20
        $region19: #{ao_attention.1} parent=11 // pred_region
          _
        $region20: #{ao_attention.1} parent=11 // pred_fallthru
          _
        // Predicated region
        $region21: #{ao_attention.1} parent=11 // pred_check
          %p269 = pneg %p159
        $region22: #{ao_attention.1} parent=11 // pred_check_branch
          %271 = sbr.rel (%p269) target = $region24
        $region23: #{ao_attention.1} parent=11 // pred_region
          _
        $region24: #{ao_attention.1} parent=11 // pred_fallthru
          _
        // Predicated region
        $region25: #{ao_attention.1} parent=11 // pred_check
          %p272 = pneg %p180
        $region26: #{ao_attention.1} parent=11 // pred_check_branch
          %274 = sbr.rel (%p272) target = $region28
        $region27: #{ao_attention.1} parent=11 // pred_region
          _
        $region28: #{ao_attention.1} parent=11 // pred_fallthru
          _
        // Predicated region
        $region29: #{ao_attention.1} parent=11 // pred_check
          %p275 = pneg %p201
        $region30: #{ao_attention.1} parent=11 // pred_check_branch
          %277 = sbr.rel (%p275) target = $region32
        $region31: #{ao_attention.1} parent=11 // pred_region
          _
        $region32: #{ao_attention.1} parent=11 // pred_fallthru
          _
        // Predicated region
        $region33: #{ao_attention.1} parent=11 // pred_check
          %p278 = pneg %p222
        $region34: #{ao_attention.1} parent=11 // pred_check_branch
          %280 = sbr.rel (%p278) target = $region36
        $region35: #{ao_attention.1} parent=11 // pred_region
          _
        $region36: #{ao_attention.1} parent=11 // pred_fallthru
          _
      $region12: #{ao_attention.1} parent=5 // pred_fallthru
        _
      %p281 = scmp.lt.s32.totalorder %s18, 2
      // Predicated region
      $region37: #{ao_attention.1} parent=5 // pred_check
        %p282 = pneg %p281
      $region38: #{ao_attention.1} parent=5 // pred_check_branch
        %284 = sbr.rel (%p282) target = $region40
      $region39: #{ao_attention.1} parent=5 // pred_region
        // Predicated region
        $region41: #{ao_attention.1} parent=39 // pred_check
          %p285 = pneg %p38
        $region42: #{ao_attention.1} parent=39 // pred_check_branch
          %287 = sbr.rel (%p285) target = $region44
        $region43: #{ao_attention.1} parent=39 // pred_region
          %p288 = scmp.lt.s32.totalorder %s18, 1
          %s289 = scalar_select %p288, %s18, 1
          %s290 = smul.addr %s289, 8
          %s291 = scalar_lea.vmem %s0, %s290
        $region44: #{ao_attention.1} parent=39 // pred_fallthru
          _
        // Predicated region
        $region45: #{ao_attention.1} parent=39 // pred_check
          %p292 = pneg %p64
        $region46: #{ao_attention.1} parent=39 // pred_check_branch
          %294 = sbr.rel (%p292) target = $region48
        $region47: #{ao_attention.1} parent=39 // pred_region
          %p295 = scmp.lt.s32.totalorder %s18, 1
          %s296 = scalar_select %p295, %s18, 1
          %s297 = smul.addr %s296, 8
          %s298 = scalar_lea.vmem %s1, %s297
        $region48: #{ao_attention.1} parent=39 // pred_fallthru
          _
        // Predicated region
        $region49: #{ao_attention.1} parent=39 // pred_check
          %p299 = pneg %p90
        $region50: #{ao_attention.1} parent=39 // pred_check_branch
          %301 = sbr.rel (%p299) target = $region52
        $region51: #{ao_attention.1} parent=39 // pred_region
          %p302 = scmp.lt.s32.totalorder %s18, 1
          %s303 = scalar_select %p302, %s18, 1
          %s304 = smul.addr %s303, 8
          %s305 = scalar_lea.vmem %s2, %s304
        $region52: #{ao_attention.1} parent=39 // pred_fallthru
          _
      $region40: #{ao_attention.1} parent=5 // pred_fallthru
        _
      %p306 = scmp.le.s32.totalorder 1, %s18
      %p307 = scmp.lt.s32.totalorder %s18, 3
      %p308 = pnand %p306, %p307
      %p309 = pneg %p308
      // Predicated region
      $region53: #{ao_attention.1} parent=5 // pred_check
        _
      $region54: #{ao_attention.1} parent=5 // pred_check_branch
        %311 = sbr.rel (%p308) target = $region56
      $region55: #{ao_attention.1} parent=5 // pred_region
        %s312 = ssub.s32 %s18, 1
        %p313 = scmp.lt.s32.totalorder %s23, 1
        %s314 = scalar_select %p313, %s23, 1
        %s315 = smul.addr %s314, 8
        %s316 = scalar_lea.vmem %s0, %s315
        %p317 = pneg %p44
        %p318 = pneg %p41
        %p319 = scmp.lt.s32.totalorder %s23, 1
        %s320 = scalar_select %p319, %s23, 1
        %s321 = smul.addr %s320, 8
        %s322 = scalar_lea.vmem %s1, %s321
        %p323 = pneg %p70
        %p324 = pneg %p67
        %p325 = scmp.lt.s32.totalorder %s23, 1
        %s326 = scalar_select %p325, %s23, 1
        %s327 = smul.addr %s326, 8
        %s328 = scalar_lea.vmem %s2, %s327
        %p329 = pneg %p96
        %p330 = pneg %p93
        %p331 = pneg %p117
        %p332 = pneg %p114
        %p333 = pneg %p138
        %p334 = pneg %p135
        %p335 = pneg %p159
        %p336 = pneg %p156
        %p337 = pneg %p180
        %p338 = pneg %p177
        %p339 = pneg %p201
        %p340 = pneg %p198
        %p341 = pneg %p222
        %p342 = pneg %p219
        %p343 = pneg %p248
        %p344 = pneg %p245
        %s345 = sand.u32 %s235, 1
        %s346 = scalar_lea.sflag [#allocation3], %s345
        %s347 = sand.u32 %s235, 1
        %s348 = smul.addr %s347, 8
        %s349 = scalar_lea.vmem [#allocation2], %s348
        %p350 = scmp.lt.s32.totalorder %s23, 1
        %s351 = scalar_select %p350, %s23, 1
        %s352 = smul.addr %s351, 8
        %s353 = scalar_lea.vmem %s0, %s352
        %p354 = scmp.lt.s32.totalorder %s23, 1
        %s355 = scalar_select %p354, %s23, 1
        %s356 = smul.addr %s355, 8
        %s357 = scalar_lea.vmem %s1, %s356
        %p358 = scmp.lt.s32.totalorder %s23, 1
        %s359 = scalar_select %p358, %s23, 1
        %s360 = smul.addr %s359, 8
        %s361 = scalar_lea.vmem %s2, %s360
        %v362 = vld [vmem:[%s353] sm:$0xff]
        %v363 = vld [vmem:[%s357] sm:$0xff]
        %v364 = vld [vmem:[%s361] sm:$0xff]
        %v365 = vmul.f32 %v362, %v362
        %vm366 = vcmask 261120
        %v367 = vsel %vm366, %v365, 0.0
        %368 = vadd.xlane.f32.xlu0 %v367
        %v369 = vpop.xlane.xlu0 %368
        %v370 = vrsqrt.pop %v369
        %v371 = vmul.f32 %v369, %v370
        %vm372 = vcmp.eq.f32.partialorder %v369, inf
        %v373 = vsel %vm372, %v369, %v371
        %vm374 = vcmp.eq.f32.partialorder %v369, 0.0
        %v375 = vand.u32 %v369, 2147483648
        %v376 = vsel %vm374, %v375, %v373
        %v377 = vmax.f32 %v376, 1e-08
        %v378 = vrcp.pop %v377
        %v379 = vmul.f32 %v362, %v378
        %v380 = vmul.f32 %v363, %v363
        %v381 = vsel %vm366, %v380, 0.0
        %382 = vadd.xlane.f32.xlu0 %v381
        %v383 = vpop.xlane.xlu0 %382
        %v384 = vrsqrt.pop %v383
        %v385 = vmul.f32 %v383, %v384
        %vm386 = vcmp.eq.f32.partialorder %v383, inf
        %v387 = vsel %vm386, %v383, %v385
        %vm388 = vcmp.eq.f32.partialorder %v383, 0.0
        %v389 = vand.u32 %v383, 2147483648
        %v390 = vsel %vm388, %v389, %v387
        %v391 = vmax.f32 %v390, 1e-08
        %v392 = vrcp.pop %v391
        %v393 = vmul.f32 %v363, %v392
        %v395 = vsel %vm366, %v379, 0
        %v398 = vsel %vm366, %v393, 0
        %400 = vmatprep.subr.mxu0 0.0
        %401 = vmatpush1.xpose.msra.mxu0 0.0
        %402 = vmatprep.subr.mxu0 0.0
        %403 = vmatpush1.xpose.msra.mxu0 0.0
        %404 = vmatprep.subr.mxu0 0.0
        %405 = vmatpush1.xpose.msra.mxu0 0.0
        %406 = vmatprep.subr.mxu0 0.0
        %407 = vmatpush1.xpose.msra.mxu0 0.0
        %408 = vmatprep.subr.mxu0 0.0
        %409 = vmatpush1.xpose.msra.mxu0 0.0
        %410 = vmatprep.subr.mxu0 0.0
        %411 = vmatpush1.xpose.msra.mxu0 0.0
        %412 = vmatprep.subr.mxu0 0.0
        %413 = vmatpush1.xpose.msra.mxu0 0.0
        %414 = vmatprep.subr.mxu0 0.0
        %415 = vmatpush1.xpose.msra.mxu0 0.0
        %416 = vmatprep.subr.mxu0 0.0
        %417 = vmatpush1.xpose.msra.mxu0 0.0
        %418 = vmatprep.subr.mxu0 0.0
        %419 = vmatpush1.xpose.msra.mxu0 0.0
        %420 = vmatprep.subr.mxu0 0.0
        %421 = vmatpush1.xpose.msra.mxu0 0.0
        %422 = vmatprep.subr.mxu0 0.0
        %423 = vmatpush1.xpose.msra.mxu0 0.0
        %424 = vmatprep.subr.mxu0 0.0
        %425 = vmatpush1.xpose.msra.mxu0 0.0
        %426 = vmatprep.subr.mxu0 0.0
        %427 = vmatpush1.xpose.msra.mxu0 0.0
        %428 = vmatprep.subr.mxu0 0.0
        %429 = vmatpush1.xpose.msra.mxu0 0.0
        %430 = vmatprep.subr.mxu0 0.0
        %431 = vmatpush1.xpose.msra.mxu0 %v398
        %432 = vmatprep.subr.mxu0 0.0
        %433 = vmatpush2.xpose.msra.mxu0 0.0
        %434 = vmatprep.subr.mxu0 0.0
        %435 = vmatpush2.xpose.msra.mxu0 0.0
        %436 = vmatprep.subr.mxu0 0.0
        %437 = vmatpush2.xpose.msra.mxu0 0.0
        %438 = vmatprep.subr.mxu0 0.0
        %439 = vmatpush2.xpose.msra.mxu0 0.0
        %440 = vmatprep.subr.mxu0 0.0
        %441 = vmatpush2.xpose.msra.mxu0 0.0
        %442 = vmatprep.subr.mxu0 0.0
        %443 = vmatpush2.xpose.msra.mxu0 0.0
        %444 = vmatprep.subr.mxu0 0.0
        %445 = vmatpush2.xpose.msra.mxu0 0.0
        %446 = vmatprep.subr.mxu0 0.0
        %447 = vmatpush2.xpose.msra.mxu0 0.0
        %448 = vmatprep.subr.mxu0 0.0
        %449 = vmatpush2.xpose.msra.mxu0 0.0
        %450 = vmatprep.subr.mxu0 0.0
        %451 = vmatpush2.xpose.msra.mxu0 0.0
        %452 = vmatprep.subr.mxu0 0.0
        %453 = vmatpush2.xpose.msra.mxu0 0.0
        %454 = vmatprep.subr.mxu0 0.0
        %455 = vmatpush2.xpose.msra.mxu0 0.0
        %456 = vmatprep.subr.mxu0 0.0
        %457 = vmatpush2.xpose.msra.mxu0 0.0
        %458 = vmatprep.subr.mxu0 0.0
        %459 = vmatpush2.xpose.msra.mxu0 0.0
        %460 = vmatprep.subr.mxu0 0.0
        %461 = vmatpush2.xpose.msra.mxu0 0.0
        %462 = vmatprep.subr.mxu0 0.0
        %463 = vmatpush2.xpose.msra.mxu0 0.0
        %464 = vmatprep.mubr.f32.mxu0 0.0
        %465 = vmatmul.mubr.f32.gmra.mxu0 %v395
        %v466 = vpop.f32.mrf.mxu0
        %v467 = vadd.f32 0.0, %v466
        %v468 = vpop.f32.mrf.mxu0
        %469 = vdwg.mxu0
        %vm470 = vcmask 64512
        %v471 = vsel %vm470, %v467, 0.0
        %472 = vadd.xlane.f32.xlu0 %v471
        %v473 = vpop.xlane.xlu0 %472
        %v474 = vrcp.pop %v473
        %v475 = vmul.f32 %v467, %v474
        %v476 = vsel %vm470, %v475, -inf
        %477 = vmax.xlane.f32.xlu0 %v476
        %v478 = vpop.xlane.xlu0 %477
        %v479 = vsub.f32 %v475, %v478
        %v480 = vmul.f32 %v479, 1.442695
        %v481 = vpow.pop %v480
        %v482 = vsel %vm470, %v481, 0.0
        %483 = vadd.xlane.f32.xlu0 %v482
        %v484 = vpop.xlane.xlu0 %483
        %v485 = vrcp.pop %v484
        %v486 = vmul.f32 %v481, %v485
        %v488 = vsel %vm470, %v486, 0
        %490 = vmatprep.subr.mxu0 0.0
        %491 = vmatpush1.msra.mxu0 0.0
        %492 = vmatprep.subr.mxu0 0.0
        %493 = vmatpush1.msra.mxu0 0.0
        %494 = vmatprep.subr.mxu0 0.0
        %495 = vmatpush1.msra.mxu0 0.0
        %496 = vmatprep.subr.mxu0 0.0
        %497 = vmatpush1.msra.mxu0 0.0
        %498 = vmatprep.subr.mxu0 0.0
        %499 = vmatpush1.msra.mxu0 0.0
        %500 = vmatprep.subr.mxu0 0.0
        %501 = vmatpush1.msra.mxu0 0.0
        %502 = vmatprep.subr.mxu0 0.0
        %503 = vmatpush1.msra.mxu0 0.0
        %504 = vmatprep.subr.mxu0 0.0
        %505 = vmatpush1.msra.mxu0 0.0
        %506 = vmatprep.subr.mxu0 0.0
        %507 = vmatpush1.msra.mxu0 0.0
        %508 = vmatprep.subr.mxu0 0.0
        %509 = vmatpush1.msra.mxu0 0.0
        %510 = vmatprep.subr.mxu0 0.0
        %511 = vmatpush1.msra.mxu0 0.0
        %512 = vmatprep.subr.mxu0 0.0
        %513 = vmatpush1.msra.mxu0 0.0
        %514 = vmatprep.subr.mxu0 0.0
        %515 = vmatpush1.msra.mxu0 0.0
        %516 = vmatprep.subr.mxu0 0.0
        %517 = vmatpush1.msra.mxu0 0.0
        %518 = vmatprep.subr.mxu0 0.0
        %519 = vmatpush1.msra.mxu0 0.0
        %520 = vmatprep.subr.mxu0 0.0
        %521 = vmatpush1.msra.mxu0 %v364
        %522 = vmatprep.subr.mxu0 0.0
        %523 = vmatpush2.msra.mxu0 0.0
        %524 = vmatprep.subr.mxu0 0.0
        %525 = vmatpush2.msra.mxu0 0.0
        %526 = vmatprep.subr.mxu0 0.0
        %527 = vmatpush2.msra.mxu0 0.0
        %528 = vmatprep.subr.mxu0 0.0
        %529 = vmatpush2.msra.mxu0 0.0
        %530 = vmatprep.subr.mxu0 0.0
        %531 = vmatpush2.msra.mxu0 0.0
        %532 = vmatprep.subr.mxu0 0.0
        %533 = vmatpush2.msra.mxu0 0.0
        %534 = vmatprep.subr.mxu0 0.0
        %535 = vmatpush2.msra.mxu0 0.0
        %536 = vmatprep.subr.mxu0 0.0
        %537 = vmatpush2.msra.mxu0 0.0
        %538 = vmatprep.subr.mxu0 0.0
        %539 = vmatpush2.msra.mxu0 0.0
        %540 = vmatprep.subr.mxu0 0.0
        %541 = vmatpush2.msra.mxu0 0.0
        %542 = vmatprep.subr.mxu0 0.0
        %543 = vmatpush2.msra.mxu0 0.0
        %544 = vmatprep.subr.mxu0 0.0
        %545 = vmatpush2.msra.mxu0 0.0
        %546 = vmatprep.subr.mxu0 0.0
        %547 = vmatpush2.msra.mxu0 0.0
        %548 = vmatprep.subr.mxu0 0.0
        %549 = vmatpush2.msra.mxu0 0.0
        %550 = vmatprep.subr.mxu0 0.0
        %551 = vmatpush2.msra.mxu0 0.0
        %552 = vmatprep.subr.mxu0 0.0
        %553 = vmatpush2.msra.mxu0 0.0
        %554 = vmatprep.mubr.f32.mxu0 0.0
        %555 = vmatmul.mubr.f32.gmra.mxu0 %v488
        %v556 = vpop.f32.mrf.mxu0
        %v557 = vadd.f32 0.0, %v556
        %v558 = vpop.f32.mrf.mxu0
        %559 = vdwg.mxu0
        %v560 = vld [vmem:[%s3] sm:$0xff]
        %v561 = vld [vmem:[%s3 + $0x8] sm:$0xff]
        %v562 = vld [vmem:[%s3 + $0x10] sm:$0xff]
        %v563 = vld [vmem:[%s3 + $0x18] sm:$0xff]
        %v564 = vld [vmem:[%s4] sm:$0xff]
        %v565 = vld [vmem:[%s4 + $0x8] sm:$0xff]
        %v566 = vld [vmem:[%s4 + $0x10] sm:$0xff]
        %v567 = vld [vmem:[%s4 + $0x18] sm:$0xff]
        %v569 = vsel %vm366, %v362, 0
        %571 = vmatprep.subr.mxu0 0.0
        %572 = vmatpush1.msra.mxu0 0.0
        %573 = vmatprep.subr.mxu0 0.0
        %574 = vmatpush1.msra.mxu0 0.0
        %575 = vmatprep.subr.mxu0 0.0
        %576 = vmatpush1.msra.mxu0 0.0
        %577 = vmatprep.subr.mxu0 0.0
        %578 = vmatpush1.msra.mxu0 0.0
        %579 = vmatprep.subr.mxu0 0.0
        %580 = vmatpush1.msra.mxu0 0.0
        %581 = vmatprep.subr.mxu0 0.0
        %582 = vmatpush1.msra.mxu0 0.0
        %583 = vmatprep.subr.mxu0 0.0
        %584 = vmatpush1.msra.mxu0 0.0
        %585 = vmatprep.subr.mxu0 0.0
        %586 = vmatpush1.msra.mxu0 0.0
        %587 = vmatprep.subr.mxu0 0.0
        %588 = vmatpush1.msra.mxu0 0.0
        %589 = vmatprep.subr.mxu0 0.0
        %590 = vmatpush1.msra.mxu0 0.0
        %591 = vmatprep.subr.mxu0 0.0
        %592 = vmatpush1.msra.mxu0 0.0
        %593 = vmatprep.subr.mxu0 0.0
        %594 = vmatpush1.msra.mxu0 0.0
        %595 = vmatprep.subr.mxu0 0.0
        %596 = vmatpush1.msra.mxu0 %v567
        %597 = vmatprep.subr.mxu0 0.0
        %598 = vmatpush1.msra.mxu0 %v566
        %599 = vmatprep.subr.mxu0 0.0
        %600 = vmatpush1.msra.mxu0 %v565
        %601 = vmatprep.subr.mxu0 0.0
        %602 = vmatpush1.msra.mxu0 %v564
        %603 = vmatprep.subr.mxu0 0.0
        %604 = vmatpush2.msra.mxu0 0.0
        %605 = vmatprep.subr.mxu0 0.0
        %606 = vmatpush2.msra.mxu0 0.0
        %607 = vmatprep.subr.mxu0 0.0
        %608 = vmatpush2.msra.mxu0 0.0
        %609 = vmatprep.subr.mxu0 0.0
        %610 = vmatpush2.msra.mxu0 0.0
        %611 = vmatprep.subr.mxu0 0.0
        %612 = vmatpush2.msra.mxu0 0.0
        %613 = vmatprep.subr.mxu0 0.0
        %614 = vmatpush2.msra.mxu0 0.0
        %615 = vmatprep.subr.mxu0 0.0
        %616 = vmatpush2.msra.mxu0 0.0
        %617 = vmatprep.subr.mxu0 0.0
        %618 = vmatpush2.msra.mxu0 0.0
        %619 = vmatprep.subr.mxu0 0.0
        %620 = vmatpush2.msra.mxu0 0.0
        %621 = vmatprep.subr.mxu0 0.0
        %622 = vmatpush2.msra.mxu0 0.0
        %623 = vmatprep.subr.mxu0 0.0
        %624 = vmatpush2.msra.mxu0 0.0
        %625 = vmatprep.subr.mxu0 0.0
        %626 = vmatpush2.msra.mxu0 0.0
        %627 = vmatprep.subr.mxu0 0.0
        %628 = vmatpush2.msra.mxu0 0.0
        %629 = vmatprep.subr.mxu0 0.0
        %630 = vmatpush2.msra.mxu0 0.0
        %631 = vmatprep.subr.mxu0 0.0
        %632 = vmatpush2.msra.mxu0 0.0
        %633 = vmatprep.subr.mxu0 0.0
        %634 = vmatpush2.msra.mxu0 0.0
        %635 = vmatprep.mubr.f32.mxu0 0.0
        %636 = vmatmul.mubr.f32.gmra.mxu0 %v569
        %v637 = vpop.f32.mrf.mxu0
        %v638 = vadd.f32 0.0, %v637
        %v639 = vpop.f32.mrf.mxu0
        %640 = vdwg.mxu0
        %v642 = vsel %vm366, %v557, 0
        %644 = vmatprep.subr.mxu0 0.0
        %645 = vmatpush1.msra.mxu0 0.0
        %646 = vmatprep.subr.mxu0 0.0
        %647 = vmatpush1.msra.mxu0 0.0
        %648 = vmatprep.subr.mxu0 0.0
        %649 = vmatpush1.msra.mxu0 0.0
        %650 = vmatprep.subr.mxu0 0.0
        %651 = vmatpush1.msra.mxu0 0.0
        %652 = vmatprep.subr.mxu0 0.0
        %653 = vmatpush1.msra.mxu0 0.0
        %654 = vmatprep.subr.mxu0 0.0
        %655 = vmatpush1.msra.mxu0 0.0
        %656 = vmatprep.subr.mxu0 0.0
        %657 = vmatpush1.msra.mxu0 0.0
        %658 = vmatprep.subr.mxu0 0.0
        %659 = vmatpush1.msra.mxu0 0.0
        %660 = vmatprep.subr.mxu0 0.0
        %661 = vmatpush1.msra.mxu0 0.0
        %662 = vmatprep.subr.mxu0 0.0
        %663 = vmatpush1.msra.mxu0 0.0
        %664 = vmatprep.subr.mxu0 0.0
        %665 = vmatpush1.msra.mxu0 0.0
        %666 = vmatprep.subr.mxu0 0.0
        %667 = vmatpush1.msra.mxu0 0.0
        %668 = vmatprep.subr.mxu0 0.0
        %669 = vmatpush1.msra.mxu0 %v563
        %670 = vmatprep.subr.mxu0 0.0
        %671 = vmatpush1.msra.mxu0 %v562
        %672 = vmatprep.subr.mxu0 0.0
        %673 = vmatpush1.msra.mxu0 %v561
        %674 = vmatprep.subr.mxu0 0.0
        %675 = vmatpush1.msra.mxu0 %v560
        %676 = vmatprep.subr.mxu0 0.0
        %677 = vmatpush2.msra.mxu0 0.0
        %678 = vmatprep.subr.mxu0 0.0
        %679 = vmatpush2.msra.mxu0 0.0
        %680 = vmatprep.subr.mxu0 0.0
        %681 = vmatpush2.msra.mxu0 0.0
        %682 = vmatprep.subr.mxu0 0.0
        %683 = vmatpush2.msra.mxu0 0.0
        %684 = vmatprep.subr.mxu0 0.0
        %685 = vmatpush2.msra.mxu0 0.0
        %686 = vmatprep.subr.mxu0 0.0
        %687 = vmatpush2.msra.mxu0 0.0
        %688 = vmatprep.subr.mxu0 0.0
        %689 = vmatpush2.msra.mxu0 0.0
        %690 = vmatprep.subr.mxu0 0.0
        %691 = vmatpush2.msra.mxu0 0.0
        %692 = vmatprep.subr.mxu0 0.0
        %693 = vmatpush2.msra.mxu0 0.0
        %694 = vmatprep.subr.mxu0 0.0
        %695 = vmatpush2.msra.mxu0 0.0
        %696 = vmatprep.subr.mxu0 0.0
        %697 = vmatpush2.msra.mxu0 0.0
        %698 = vmatprep.subr.mxu0 0.0
        %699 = vmatpush2.msra.mxu0 0.0
        %700 = vmatprep.subr.mxu0 0.0
        %701 = vmatpush2.msra.mxu0 0.0
        %702 = vmatprep.subr.mxu0 0.0
        %703 = vmatpush2.msra.mxu0 0.0
        %704 = vmatprep.subr.mxu0 0.0
        %705 = vmatpush2.msra.mxu0 0.0
        %706 = vmatprep.subr.mxu0 0.0
        %707 = vmatpush2.msra.mxu0 0.0
        %708 = vmatprep.mubr.f32.mxu0 0.0
        %709 = vmatmul.mubr.f32.gmra.mxu0 %v642
        %v710 = vpop.f32.mrf.mxu0
        %v711 = vadd.f32 %v638, %v710
        %v712 = vpop.f32.mrf.mxu0
        %713 = vdwg.mxu0
        %v714 = vld [vmem:[%s5] sm:$0x1]
        %v716 = vlaneseq
        %v717 = vshrl.u32 %v716, 7
        %v718 = vsub.s32 0, %v717
        %v719 = vrot.slane %v714, %v718
        %v721 = vadd.f32 %v711, %v719
        %v722 = vld [vmem:[%s6] sm:$0xff]
        %v723 = vld [vmem:[%s6 + $0x8] sm:$0xff]
        %v724 = vld [vmem:[%s6 + $0x10] sm:$0xff]
        %v725 = vld [vmem:[%s6 + $0x18] sm:$0xff]
        %v726 = vld [vmem:[%s7] sm:$0xff]
        %v727 = vld [vmem:[%s7 + $0x8] sm:$0xff]
        %v728 = vld [vmem:[%s7 + $0x10] sm:$0xff]
        %v729 = vld [vmem:[%s7 + $0x18] sm:$0xff]
        %730 = vmatprep.subr.mxu0 0.0
        %731 = vmatpush1.msra.mxu0 0.0
        %732 = vmatprep.subr.mxu0 0.0
        %733 = vmatpush1.msra.mxu0 0.0
        %734 = vmatprep.subr.mxu0 0.0
        %735 = vmatpush1.msra.mxu0 0.0
        %736 = vmatprep.subr.mxu0 0.0
        %737 = vmatpush1.msra.mxu0 0.0
        %738 = vmatprep.subr.mxu0 0.0
        %739 = vmatpush1.msra.mxu0 0.0
        %740 = vmatprep.subr.mxu0 0.0
        %741 = vmatpush1.msra.mxu0 0.0
        %742 = vmatprep.subr.mxu0 0.0
        %743 = vmatpush1.msra.mxu0 0.0
        %744 = vmatprep.subr.mxu0 0.0
        %745 = vmatpush1.msra.mxu0 0.0
        %746 = vmatprep.subr.mxu0 0.0
        %747 = vmatpush1.msra.mxu0 0.0
        %748 = vmatprep.subr.mxu0 0.0
        %749 = vmatpush1.msra.mxu0 0.0
        %750 = vmatprep.subr.mxu0 0.0
        %751 = vmatpush1.msra.mxu0 0.0
        %752 = vmatprep.subr.mxu0 0.0
        %753 = vmatpush1.msra.mxu0 0.0
        %754 = vmatprep.subr.mxu0 0.0
        %755 = vmatpush1.msra.mxu0 %v729
        %756 = vmatprep.subr.mxu0 0.0
        %757 = vmatpush1.msra.mxu0 %v728
        %758 = vmatprep.subr.mxu0 0.0
        %759 = vmatpush1.msra.mxu0 %v727
        %760 = vmatprep.subr.mxu0 0.0
        %761 = vmatpush1.msra.mxu0 %v726
        %762 = vmatprep.subr.mxu0 0.0
        %763 = vmatpush2.msra.mxu0 0.0
        %764 = vmatprep.subr.mxu0 0.0
        %765 = vmatpush2.msra.mxu0 0.0
        %766 = vmatprep.subr.mxu0 0.0
        %767 = vmatpush2.msra.mxu0 0.0
        %768 = vmatprep.subr.mxu0 0.0
        %769 = vmatpush2.msra.mxu0 0.0
        %770 = vmatprep.subr.mxu0 0.0
        %771 = vmatpush2.msra.mxu0 0.0
        %772 = vmatprep.subr.mxu0 0.0
        %773 = vmatpush2.msra.mxu0 0.0
        %774 = vmatprep.subr.mxu0 0.0
        %775 = vmatpush2.msra.mxu0 0.0
        %776 = vmatprep.subr.mxu0 0.0
        %777 = vmatpush2.msra.mxu0 0.0
        %778 = vmatprep.subr.mxu0 0.0
        %779 = vmatpush2.msra.mxu0 0.0
        %780 = vmatprep.subr.mxu0 0.0
        %781 = vmatpush2.msra.mxu0 0.0
        %782 = vmatprep.subr.mxu0 0.0
        %783 = vmatpush2.msra.mxu0 0.0
        %784 = vmatprep.subr.mxu0 0.0
        %785 = vmatpush2.msra.mxu0 0.0
        %786 = vmatprep.subr.mxu0 0.0
        %787 = vmatpush2.msra.mxu0 0.0
        %788 = vmatprep.subr.mxu0 0.0
        %789 = vmatpush2.msra.mxu0 0.0
        %790 = vmatprep.subr.mxu0 0.0
        %791 = vmatpush2.msra.mxu0 0.0
        %792 = vmatprep.subr.mxu0 0.0
        %793 = vmatpush2.msra.mxu0 0.0
        %794 = vmatprep.mubr.f32.mxu0 0.0
        %795 = vmatmul.mubr.f32.gmra.mxu0 %v569
        %v796 = vpop.f32.mrf.mxu0
        %v797 = vadd.f32 0.0, %v796
        %v798 = vpop.f32.mrf.mxu0
        %799 = vdwg.mxu0
        %800 = vmatprep.subr.mxu0 0.0
        %801 = vmatpush1.msra.mxu0 0.0
        %802 = vmatprep.subr.mxu0 0.0
        %803 = vmatpush1.msra.mxu0 0.0
        %804 = vmatprep.subr.mxu0 0.0
        %805 = vmatpush1.msra.mxu0 0.0
        %806 = vmatprep.subr.mxu0 0.0
        %807 = vmatpush1.msra.mxu0 0.0
        %808 = vmatprep.subr.mxu0 0.0
        %809 = vmatpush1.msra.mxu0 0.0
        %810 = vmatprep.subr.mxu0 0.0
        %811 = vmatpush1.msra.mxu0 0.0
        %812 = vmatprep.subr.mxu0 0.0
        %813 = vmatpush1.msra.mxu0 0.0
        %814 = vmatprep.subr.mxu0 0.0
        %815 = vmatpush1.msra.mxu0 0.0
        %816 = vmatprep.subr.mxu0 0.0
        %817 = vmatpush1.msra.mxu0 0.0
        %818 = vmatprep.subr.mxu0 0.0
        %819 = vmatpush1.msra.mxu0 0.0
        %820 = vmatprep.subr.mxu0 0.0
        %821 = vmatpush1.msra.mxu0 0.0
        %822 = vmatprep.subr.mxu0 0.0
        %823 = vmatpush1.msra.mxu0 0.0
        %824 = vmatprep.subr.mxu0 0.0
        %825 = vmatpush1.msra.mxu0 %v725
        %826 = vmatprep.subr.mxu0 0.0
        %827 = vmatpush1.msra.mxu0 %v724
        %828 = vmatprep.subr.mxu0 0.0
        %829 = vmatpush1.msra.mxu0 %v723
        %830 = vmatprep.subr.mxu0 0.0
        %831 = vmatpush1.msra.mxu0 %v722
        %832 = vmatprep.subr.mxu0 0.0
        %833 = vmatpush2.msra.mxu0 0.0
        %834 = vmatprep.subr.mxu0 0.0
        %835 = vmatpush2.msra.mxu0 0.0
        %836 = vmatprep.subr.mxu0 0.0
        %837 = vmatpush2.msra.mxu0 0.0
        %838 = vmatprep.subr.mxu0 0.0
        %839 = vmatpush2.msra.mxu0 0.0
        %840 = vmatprep.subr.mxu0 0.0
        %841 = vmatpush2.msra.mxu0 0.0
        %842 = vmatprep.subr.mxu0 0.0
        %843 = vmatpush2.msra.mxu0 0.0
        %844 = vmatprep.subr.mxu0 0.0
        %845 = vmatpush2.msra.mxu0 0.0
        %846 = vmatprep.subr.mxu0 0.0
        %847 = vmatpush2.msra.mxu0 0.0
        %848 = vmatprep.subr.mxu0 0.0
        %849 = vmatpush2.msra.mxu0 0.0
        %850 = vmatprep.subr.mxu0 0.0
        %851 = vmatpush2.msra.mxu0 0.0
        %852 = vmatprep.subr.mxu0 0.0
        %853 = vmatpush2.msra.mxu0 0.0
        %854 = vmatprep.subr.mxu0 0.0
        %855 = vmatpush2.msra.mxu0 0.0
        %856 = vmatprep.subr.mxu0 0.0
        %857 = vmatpush2.msra.mxu0 0.0
        %858 = vmatprep.subr.mxu0 0.0
        %859 = vmatpush2.msra.mxu0 0.0
        %860 = vmatprep.subr.mxu0 0.0
        %861 = vmatpush2.msra.mxu0 0.0
        %862 = vmatprep.subr.mxu0 0.0
        %863 = vmatpush2.msra.mxu0 0.0
        %864 = vmatprep.mubr.f32.mxu0 0.0
        %865 = vmatmul.mubr.f32.gmra.mxu0 %v642
        %v866 = vpop.f32.mrf.mxu0
        %v867 = vadd.f32 %v797, %v866
        %v868 = vpop.f32.mrf.mxu0
        %869 = vdwg.mxu0
        %v870 = vld [vmem:[%s8] sm:$0x1]
        %v872 = vlaneseq
        %v873 = vshrl.u32 %v872, 7
        %v874 = vsub.s32 0, %v873
        %v875 = vrot.slane %v870, %v874
        %v877 = vadd.f32 %v867, %v875
        %v878 = vxor.u32 %v877, 2147483648
        %v879 = vmul.f32 %v878, 1.442695
        %v880 = vpow.pop %v879
        %v881 = vadd.f32 %v880, 1.0
        %v882 = vrcp.pop %v881
        %v883 = vmul.f32 1.0, %v882
        %v884 = vmul.f32 %v883, %v721
        %885 = vst.msk [vmem:[%s349] sm:$0xff] %vm366, %v884
        %s886 = sand.u32 %s235, 1
        %s887 = scalar_lea.sflag [#allocation3], %s886
        %s888 = sand.u32 %s235, 1
        %s889 = smul.addr %s888, 8
        %s890 = scalar_lea.vmem [#allocation2], %s889
        // Predicated region
        $region57: #{ao_attention.1} parent=55 // pred_check
          %p891 = pneg %p245
        $region58: #{ao_attention.1} parent=55 // pred_check_branch
          %893 = sbr.rel (%p891) target = $region60
        $region59: #{ao_attention.1} parent=55 // pred_region
          %s895 = ssub.s32 128, 128
          %896 = vsyncadd %s887, %s895
          %s897 = smul.addr %s23, 128
          %s898 = scalar_lea.hbm %s9, %s897
          %s900 = sshll.u32 %s890, 4
          %s901 = int_to_ptr.vmem [resolvable:$true] %s900
          %903 = dma.vmem_to_hbm [thread:$0]  %s901, 128, %s898, %s887
        $region60: #{ao_attention.1} parent=55 // pred_fallthru
          _
      $region56: #{ao_attention.1} parent=5 // pred_fallthru
        _
      %p904 = scmp.le.s32.totalorder 2, %s18
      // Predicated region
      $region61: #{ao_attention.1} parent=5 // pred_check
        %p905 = pneg %p904
      $region62: #{ao_attention.1} parent=5 // pred_check_branch
        %907 = sbr.rel (%p905) target = $region64
      $region63: #{ao_attention.1} parent=5 // pred_region
        %s908 = ssub.s32 %s18, 2
        // Predicated region
        $region65: #{ao_attention.1} parent=63 // pred_check
          %p909 = pneg %p251
        $region66: #{ao_attention.1} parent=63 // pred_check_branch
          %911 = sbr.rel (%p909) target = $region68
        $region67: #{ao_attention.1} parent=63 // pred_region
          %s912 = sand.u32 %s236, 1
          %s913 = scalar_lea.sflag [#allocation3], %s912
          %s914 = sand.u32 %s236, 1
          %s915 = smul.addr %s914, 8
          %s916 = scalar_lea.vmem [#allocation2], %s915
          %917 = dma.done %s913, 128
        $region68: #{ao_attention.1} parent=63 // pred_fallthru
          _
      $region64: #{ao_attention.1} parent=5 // pred_fallthru
        _
    $region6: #{ao_attention.1} parent=1 // loop_footer
      %s22 = sadd.s32 1, %s18
    $region7: #{ao_attention.1} parent=1 // loop_footer_branch
      %17 = sbr.rel target = $region3
    $region8: #{ao_attention.1} parent=1 // loop_exit
      _
    %918 = vsyncpa [#allocation3], 1
    %s919 = scalar_lea.sflag [#allocation3], 1
    %920 = vsyncpa %s919, 1

</llo_original>
